<compile_context>
chip_gen: v5e
topology: v5e:2x2
jax: 0.10.0
libtpu: 0.0.40
codegen_flags: <defaults>
</compile_context>

<pallas_src>
import functools

import jax
import jax.numpy as jnp
from jax.experimental import pallas as pl
from jax.experimental.pallas import tpu as pltpu


def _channel_attention_kernel(x_ref, w1_ref, w2t_ref, o_ref, *, inv_hw):
    # x_ref/o_ref: (Bt, C, HWp)   w1_ref: (hidden, C)   w2t_ref: (hidden, C)
    # 1) Global average pool over the spatial (lane) axis, f32 accumulation.
    #    inv_hw = 1 / (true H*W), so zero lane-padding does not bias the mean.
    y = jnp.sum(x_ref[...], axis=-1, dtype=jnp.float32) * inv_hw           # (Bt, C)

    # 2) Squeeze-excite MLP on the VPU/XLU (hidden = C // reduction is tiny;
    #    N=1 MXU dots would waste two serial MXU round trips per grid step).
    w1 = w1_ref[...].astype(jnp.float32)                                    # (hidden, C)
    w2t = w2t_ref[...].astype(jnp.float32)                                  # (hidden, C)
    h = jnp.sum(y[:, None, :] * w1[None, :, :], axis=-1)                    # (Bt, hidden)
    h = jnp.maximum(h, 0.0)                                                 # ReLU
    z = jnp.sum(h[:, :, None] * w2t[None, :, :], axis=1)                    # (Bt, C)
    gate = jax.nn.sigmoid(z)                                                # (Bt, C)

    # 3) Per-channel gate, broadcast along lanes.  Re-read x from VMEM (idle
    #    vld slots) instead of holding the upcast tile live across the MLP.
    o_ref[...] = (x_ref[...] * gate[:, :, None].astype(x_ref.dtype)).astype(o_ref.dtype)


def channel_attention(x, fc1_w, fc2_w):
    """x: (B, C, H, W) NCHW; fc1_w: (C//r, C); fc2_w: (C, C//r). Returns NCHW."""
    B, C, H, W = x.shape
    HW = H * W
    hidden = fc1_w.shape[0]

    # Lane-dense last dim: pad H*W up to a multiple of 128 (cheap wrapper pad;
    # avoids masked partial stores).  Demo HW=256 needs no padding.
    HWp = pl.cdiv(HW, 128) * 128
    x2 = x.reshape(B, C, HW)                      # contiguous reshape of NCHW
    if HWp != HW:
        x2 = jnp.pad(x2, ((0, 0), (0, 0), (0, HWp - HW)))

    # ---- choose batch tile Bt -------------------------------------------
    itemsize = jnp.dtype(x.dtype).itemsize
    per_image = C * HWp * itemsize
    # 2x double-buffered input + output blocks must fit this budget
    # (16 MiB fits the v5e scoped-VMEM default and leaves headroom on v7x).
    block_budget = 16 << 20
    max_bt = max(1, block_budget // (4 * per_image))
    # Keep >= 2 grid steps whenever B >= 2 so the "parallel" batch axis can be
    # sharded across v7x's 2 TensorCores; on v5e/v6e this costs nothing.
    target = min(max_bt, max(1, B // 2)) if B >= 2 else 1
    bt = 1
    for d in range(1, B + 1):                     # largest divisor of B <= target
        if B % d == 0 and d <= target:
            bt = d
    grid = (B // bt,)

    vmem_needed = 4 * bt * per_image + 2 * hidden * C * 4 + (2 << 20)
    vmem_limit = int(min(max(vmem_needed, 32 << 20), 48 << 20))

    kernel = functools.partial(_channel_attention_kernel, inv_hw=1.0 / HW)
    out = pl.pallas_call(
        kernel,
        out_shape=jax.ShapeDtypeStruct((B, C, HWp), x.dtype),
        grid=grid,
        in_specs=[
            pl.BlockSpec((bt, C, HWp), lambda b: (b, 0, 0)),
            pl.BlockSpec((hidden, C), lambda b: (0, 0)),
            pl.BlockSpec((hidden, C), lambda b: (0, 0)),
        ],
        out_specs=pl.BlockSpec((bt, C, HWp), lambda b: (b, 0, 0)),
        input_output_aliases={0: 0},              # output reuses x2's HBM buffer
        compiler_params=pltpu.CompilerParams(
            dimension_semantics=("parallel",),
            vmem_limit_bytes=vmem_limit),
    )(x2, fc1_w, fc2_w.T)                         # fc2 passed transposed: (hidden, C)
    # TODO(synk): if a single image's (C, HWp) block ever exceeds the VMEM
    # budget (huge feature maps, esp. on v7x's 64 MiB), add a spatially tiled
    # two-pass pool+scale path; unnecessary at FSPNet decoder / demo sizes.

    if HWp != HW:
        out = out[:, :, :HW]
    return out.reshape(B, C, H, W)


def channel_attention_ref(x, fc1_w, fc2_w):
    """Pure-JAX reference matching the PyTorch module."""
    y = jnp.mean(x, axis=(2, 3))                  # (B, C)
    h = jnp.maximum(y @ fc1_w.T, 0.0)             # (B, hidden)
    g = jax.nn.sigmoid(h @ fc2_w.T)               # (B, C)
    return x * g[:, :, None, None]


if __name__ == "__main__":
    key = jax.random.PRNGKey(0)
    B, C, H, W = 2, 64, 16, 16
    reduction = 16
    hidden = C // reduction                       # 4

    kx, k1, k2 = jax.random.split(key, 3)
    x = jax.random.normal(kx, (B, C, H, W), jnp.float32)
    # nn.Linear default init: U(-1/sqrt(fan_in), 1/sqrt(fan_in)), bias=False
    w1 = jax.random.uniform(k1, (hidden, C), jnp.float32,
                            minval=-1.0, maxval=1.0) / jnp.sqrt(float(C))
    w2 = jax.random.uniform(k2, (C, hidden), jnp.float32,
                            minval=-1.0, maxval=1.0) / jnp.sqrt(float(hidden))

    fwd = jax.jit(channel_attention)
    out = fwd(x, w1, w2)
    jax.block_until_ready(out)

    assert out.shape == (B, C, H, W), out.shape
    assert out.dtype == jnp.float32, out.dtype

    ref = channel_attention_ref(x, w1, w2)
    err = float(jnp.max(jnp.abs(out - ref)))
    assert err < 1e-2, f"max abs error {err}"

    print("KERNEL_OK")
</pallas_src>

<mosaic_0001>
module attributes {stable_mosaic.version = 11 : i64} {
  func.func @_channel_attention_kernel(%arg0: i32, %arg1: memref<1x64x256xf32, #tpu.memory_space<vmem>>, %arg2: memref<4x64xf32, #tpu.memory_space<vmem>>, %arg3: memref<4x64xf32, #tpu.memory_space<vmem>>, %arg4: memref<1x64x256xf32, #tpu.memory_space<vmem>>) attributes {dimension_semantics = [#tpu.dimension_semantics<parallel>], iteration_bounds = array<i64: 2>, scalar_prefetch = 0 : i64, scratch_operands = 0 : i64, tpu.core_type = #tpu.core_type<tc>, window_params = [{transform_indices = @transform_0, window_bounds = array<i64: 1, 64, 256>}, {pipeline_mode = #tpu.pipeline_mode<synchronous>, transform_indices = @transform_1, window_bounds = array<i64: 4, 64>}, {pipeline_mode = #tpu.pipeline_mode<synchronous>, transform_indices = @transform_2, window_bounds = array<i64: 4, 64>}, {transform_indices = @transform_3, window_bounds = array<i64: 1, 64, 256>}]} {
    %c0 = arith.constant 0 : index
    %c0_0 = arith.constant 0 : index
    %c0_1 = arith.constant 0 : index
    %0 = vector.load %arg1[%c0, %c0_0, %c0_1] : memref<1x64x256xf32, #tpu.memory_space<vmem>>, vector<1x64x256xf32>
    %cst = arith.constant dense<0.000000e+00> : vector<1x64xf32>
    %1 = vector.multi_reduction <add>, %0, %cst [2] : vector<1x64x256xf32> to vector<1x64xf32>
    %cst_2 = arith.constant 3.906250e-03 : f32
    %2 = vector.broadcast %cst_2 : f32 to vector<1x64xf32>
    %3 = arith.mulf %1, %2 : vector<1x64xf32>
    %c0_3 = arith.constant 0 : index
    %c0_4 = arith.constant 0 : index
    %4 = vector.load %arg2[%c0_3, %c0_4] : memref<4x64xf32, #tpu.memory_space<vmem>>, vector<4x64xf32>
    %c0_5 = arith.constant 0 : index
    %c0_6 = arith.constant 0 : index
    %5 = vector.load %arg3[%c0_5, %c0_6] : memref<4x64xf32, #tpu.memory_space<vmem>>, vector<4x64xf32>
    %6 = vector.shape_cast %3 : vector<1x64xf32> to vector<1x1x64xf32>
    %7 = vector.shape_cast %4 : vector<4x64xf32> to vector<1x4x64xf32>
    %8 = vector.broadcast %6 : vector<1x1x64xf32> to vector<1x4x64xf32>
    %9 = arith.mulf %8, %7 : vector<1x4x64xf32>
    %cst_7 = arith.constant dense<0.000000e+00> : vector<1x4xf32>
    %10 = vector.multi_reduction <add>, %9, %cst_7 [2] : vector<1x4x64xf32> to vector<1x4xf32>
    %cst_8 = arith.constant 0.000000e+00 : f32
    %11 = vector.broadcast %cst_8 : f32 to vector<1x4xf32>
    %12 = arith.maximumf %10, %11 : vector<1x4xf32>
    %13 = vector.shape_cast %12 : vector<1x4xf32> to vector<1x4x1xf32>
    %14 = vector.shape_cast %5 : vector<4x64xf32> to vector<1x4x64xf32>
    %15 = vector.broadcast %13 : vector<1x4x1xf32> to vector<1x4x64xf32>
    %16 = arith.mulf %15, %14 : vector<1x4x64xf32>
    %cst_9 = arith.constant dense<0.000000e+00> : vector<1x64xf32>
    %17 = vector.multi_reduction <add>, %16, %cst_9 [1] : vector<1x4x64xf32> to vector<1x64xf32>
    %18 = arith.negf %17 : vector<1x64xf32>
    %19 = math.exp %18 : vector<1x64xf32>
    %cst_10 = arith.constant 1.000000e+00 : f32
    %20 = vector.broadcast %cst_10 : f32 to vector<1x64xf32>
    %21 = arith.addf %20, %19 : vector<1x64xf32>
    %22 = arith.divf %20, %21 : vector<1x64xf32>
    %c0_11 = arith.constant 0 : index
    %c0_12 = arith.constant 0 : index
    %c0_13 = arith.constant 0 : index
    %23 = vector.load %arg1[%c0_11, %c0_12, %c0_13] : memref<1x64x256xf32, #tpu.memory_space<vmem>>, vector<1x64x256xf32>
    %24 = vector.shape_cast %22 : vector<1x64xf32> to vector<1x64x1xf32>
    %25 = vector.broadcast %24 : vector<1x64x1xf32> to vector<1x64x256xf32>
    %26 = arith.mulf %23, %25 : vector<1x64x256xf32>
    %c0_14 = arith.constant 0 : index
    %c0_15 = arith.constant 0 : index
    %c0_16 = arith.constant 0 : index
    %27 = vector.load %arg4[%c0_14, %c0_15, %c0_16] : memref<1x64x256xf32, #tpu.memory_space<vmem>>, vector<1x64x256xf32>
    tpu.vector_store %arg4[%c0_14, %c0_15, %c0_16], %26 {strides = array<i32>} : memref<1x64x256xf32, #tpu.memory_space<vmem>>, vector<1x64x256xf32>,
    return
  }
  func.func @transform_0(%arg0: i32) -> (i32, i32, i32) {
    %c0_i32 = arith.constant 0 : i32
    %c0_i32_0 = arith.constant 0 : i32
    %c0_i32_1 = arith.constant 0 : i32
    return %arg0, %c0_i32, %c0_i32_0 : i32, i32, i32
  }
  func.func @transform_1(%arg0: i32) -> (i32, i32) {
    %c0_i32 = arith.constant 0 : i32
    %c0_i32_0 = arith.constant 0 : i32
    %c0_i32_1 = arith.constant 0 : i32
    return %c0_i32, %c0_i32_0 : i32, i32
  }
  func.func @transform_2(%arg0: i32) -> (i32, i32) {
    %c0_i32 = arith.constant 0 : i32
    %c0_i32_0 = arith.constant 0 : i32
    %c0_i32_1 = arith.constant 0 : i32
    return %c0_i32, %c0_i32_0 : i32, i32
  }
  func.func @transform_3(%arg0: i32) -> (i32, i32, i32) {
    %c0_i32 = arith.constant 0 : i32
    %c0_i32_0 = arith.constant 0 : i32
    %c0_i32_1 = arith.constant 0 : i32
    return %arg0, %c0_i32, %c0_i32_0 : i32, i32, i32
  }
}

</mosaic_0001>

<llo_original>
// kernel: channel_attention.1
$region0: #{channel_attention.1}
  #allocation0 [shape = 'u32[]', space=smem, size = 0x4, offset = 0x4, fixed_abs, tag = 'smem constant byte address 0x4 - core index']
  #allocation1 [shape = 'u32[72,128]{1,0:T(1,128)}', space=vmem, size = 0x9000, scoped, tag = 'internal scratch']
  %s0 = inlined_call_operand.vmem [shape: f32[2,64,256], index: 0, kind: input, shape index: {}, may-alias: {0,3}]
  %s1 = inlined_call_operand.vmem [shape: f32[4,64], index: 1, kind: input, shape index: {}]
  %s2 = inlined_call_operand.vmem [shape: f32[4,64], index: 2, kind: input, shape index: {}]
  %s3 = inlined_call_operand.vmem [shape: f32[2,64,256], index: 3, kind: output, shape index: {}, may-alias: {0,3}]
  %s4 = sld [smem:[#allocation0]]
  $region45: #{channel_attention.1} parent=0
    _
  %s6 = ssub.s32 1, %s4
  %s7 = scalar_select 0, %s6, %s4
  loop: start=0, step=1, limit=4
  $region2: #{channel_attention.1} parent=0 // loop_pre_header
    _
  $region3: #{channel_attention.1} parent=0 // loop_header
    %s9 = sphi 0, %s13
    %p10 = scmp.ge.s32.totalorder %s9, 4
    %s19 = sphi 0, %s21
    %s22 = sphi 0, %s19
    %s23 = sphi 0, %s22
    %s39 = sphi 0, %s23
    %s43 = sphi 0, %s43
    %s45 = sphi 0, %s43
    %s46 = sphi 0, %s45
    %s60 = sphi 0, %s46
    %s64 = sphi 0, %s64
    %s66 = sphi 0, %s64
    %s67 = sphi 0, %s66
    %s81 = sphi 0, %s67
    %s87 = sphi 0, %s89
    %s90 = sphi 0, %s87
    %s91 = sphi 0, %s90
    %s107 = sphi 0, %s91
  $region4: #{channel_attention.1} parent=0 // loop_header_branch
    %12 = sbr.rel (%p10) target = $region8
  $region5: #{channel_attention.1} parent=0 // loop_body
    %s14 = ssub.s32 %s9, 1
    %s15 = ssub.s32 %s9, 2
    %s16 = sadd.s32 %s9, 1
    %s17 = ssub.s32 %s9, %s16
    %p18 = scmp.eq.s32.totalorder %s17, 0
    %s20 = sadd.s32 %s19, 1
    %s21 = scalar_select %p18, %s19, %s20
    %p24 = pneg %p18
    %p25 = scmp.eq.s32.totalorder %s9, 1
    %p26 = por %p24, %p25
    %p27 = scmp.ne.s32.totalorder %s19, %s22
    %p28 = scmp.eq.s32.totalorder %s9, 0
    %p29 = por %p27, %p28
    %p30 = scmp.ne.s32.totalorder %s19, %s22
    %p31 = scmp.eq.s32.totalorder %s14, 1
    %p32 = por %p30, %p31
    %p33 = scmp.ne.s32.totalorder %s22, %s23
    %p34 = scmp.eq.s32.totalorder %s14, 0
    %p35 = por %p33, %p34
    %p36 = scmp.ne.s32.totalorder %s22, %s23
    %p37 = scmp.eq.s32.totalorder %s15, 1
    %p38 = por %p36, %p37
    %p40 = scmp.ne.s32.totalorder %s23, %s39
    %p41 = scmp.eq.s32.totalorder %s15, 0
    %p42 = por %p40, %p41
    %s44 = sadd.s32 %s43, 1
    %p47 = scmp.eq.s32.totalorder %s9, 1
    %p48 = scmp.ne.s32.totalorder %s43, %s45
    %p49 = scmp.eq.s32.totalorder %s9, 0
    %p50 = por %p48, %p49
    %p51 = scmp.ne.s32.totalorder %s43, %s45
    %p52 = scmp.eq.s32.totalorder %s14, 1
    %p53 = por %p51, %p52
    %p54 = scmp.ne.s32.totalorder %s45, %s46
    %p55 = scmp.eq.s32.totalorder %s14, 0
    %p56 = por %p54, %p55
    %p57 = scmp.ne.s32.totalorder %s45, %s46
    %p58 = scmp.eq.s32.totalorder %s15, 1
    %p59 = por %p57, %p58
    %p61 = scmp.ne.s32.totalorder %s46, %s60
    %p62 = scmp.eq.s32.totalorder %s15, 0
    %p63 = por %p61, %p62
    %s65 = sadd.s32 %s64, 1
    %p68 = scmp.eq.s32.totalorder %s9, 1
    %p69 = scmp.ne.s32.totalorder %s64, %s66
    %p70 = scmp.eq.s32.totalorder %s9, 0
    %p71 = por %p69, %p70
    %p72 = scmp.ne.s32.totalorder %s64, %s66
    %p73 = scmp.eq.s32.totalorder %s14, 1
    %p74 = por %p72, %p73
    %p75 = scmp.ne.s32.totalorder %s66, %s67
    %p76 = scmp.eq.s32.totalorder %s14, 0
    %p77 = por %p75, %p76
    %p78 = scmp.ne.s32.totalorder %s66, %s67
    %p79 = scmp.eq.s32.totalorder %s15, 1
    %p80 = por %p78, %p79
    %p82 = scmp.ne.s32.totalorder %s67, %s81
    %p83 = scmp.eq.s32.totalorder %s15, 0
    %p84 = por %p82, %p83
    %s85 = ssub.s32 %s9, %s16
    %p86 = scmp.eq.s32.totalorder %s85, 0
    %s88 = sadd.s32 %s87, 1
    %s89 = scalar_select %p86, %s87, %s88
    %p92 = pneg %p86
    %p93 = scmp.eq.s32.totalorder %s9, 1
    %p94 = por %p92, %p93
    %p95 = scmp.ne.s32.totalorder %s87, %s90
    %p96 = scmp.eq.s32.totalorder %s9, 0
    %p97 = por %p95, %p96
    %p98 = scmp.ne.s32.totalorder %s87, %s90
    %p99 = scmp.eq.s32.totalorder %s14, 1
    %p100 = por %p98, %p99
    %p101 = scmp.ne.s32.totalorder %s90, %s91
    %p102 = scmp.eq.s32.totalorder %s14, 0
    %p103 = por %p101, %p102
    %p104 = scmp.ne.s32.totalorder %s90, %s91
    %p105 = scmp.eq.s32.totalorder %s15, 1
    %p106 = por %p104, %p105
    %p108 = scmp.ne.s32.totalorder %s91, %s107
    %p109 = scmp.eq.s32.totalorder %s15, 0
    %p110 = por %p108, %p109
    %p111 = scmp.le.s32.totalorder 1, %s9
    %p112 = scmp.lt.s32.totalorder %s9, 3
    %p113 = pnand %p111, %p112
    %p114 = pneg %p113
    // Predicated region
    $region9: #{channel_attention.1} parent=5 // pred_check
      _
    $region10: #{channel_attention.1} parent=5 // pred_check_branch
      %116 = sbr.rel (%p113) target = $region12
    $region11: #{channel_attention.1} parent=5 // pred_region
      %s117 = ssub.s32 %s9, 1
      // Predicated region
      $region13: #{channel_attention.1} parent=11 // pred_check
        %p118 = pneg %p56
      $region14: #{channel_attention.1} parent=11 // pred_check_branch
        %120 = sbr.rel (%p118) target = $region16
      $region15: #{channel_attention.1} parent=11 // pred_region
        _
      $region16: #{channel_attention.1} parent=11 // pred_fallthru
        _
      // Predicated region
      $region17: #{channel_attention.1} parent=11 // pred_check
        %p121 = pneg %p77
      $region18: #{channel_attention.1} parent=11 // pred_check_branch
        %123 = sbr.rel (%p121) target = $region20
      $region19: #{channel_attention.1} parent=11 // pred_region
        _
      $region20: #{channel_attention.1} parent=11 // pred_fallthru
        _
    $region12: #{channel_attention.1} parent=5 // pred_fallthru
      _
    %p124 = scmp.lt.s32.totalorder %s9, 2
    // Predicated region
    $region21: #{channel_attention.1} parent=5 // pred_check
      %p125 = pneg %p124
    $region22: #{channel_attention.1} parent=5 // pred_check_branch
      %127 = sbr.rel (%p125) target = $region24
    $region23: #{channel_attention.1} parent=5 // pred_region
      // Predicated region
      $region25: #{channel_attention.1} parent=23 // pred_check
        %p128 = pneg %p29
      $region26: #{channel_attention.1} parent=23 // pred_check_branch
        %130 = sbr.rel (%p128) target = $region28
      $region27: #{channel_attention.1} parent=23 // pred_region
        %p131 = scmp.lt.s32.totalorder %s9, 1
        %s132 = scalar_select %p131, %s9, 1
        %s133 = smul.addr %s132, 16
        %s134 = smul.addr %s133, 8
        %s135 = scalar_lea.vmem %s0, %s134
      $region28: #{channel_attention.1} parent=23 // pred_fallthru
        _
    $region24: #{channel_attention.1} parent=5 // pred_fallthru
      _
    %p136 = scmp.le.s32.totalorder 1, %s9
    %p137 = scmp.lt.s32.totalorder %s9, 3
    %p138 = pnand %p136, %p137
    %p139 = pneg %p138
    // Predicated region
    $region29: #{channel_attention.1} parent=5 // pred_check
      _
    $region30: #{channel_attention.1} parent=5 // pred_check_branch
      %141 = sbr.rel (%p138) target = $region32
    $region31: #{channel_attention.1} parent=5 // pred_region
      %s142 = ssub.s32 %s9, 1
      %p143 = scmp.lt.s32.totalorder %s14, 1
      %s144 = scalar_select %p143, %s14, 1
      %s145 = smul.addr %s144, 16
      %s146 = smul.addr %s145, 8
      %s147 = scalar_lea.vmem %s0, %s146
      %p148 = pneg %p35
      %p149 = pneg %p32
      %p150 = pneg %p56
      %p151 = pneg %p53
      %p152 = pneg %p77
      %p153 = pneg %p74
      %p154 = pneg %p103
      %p155 = pneg %p100
      %p156 = scmp.lt.s32.totalorder %s14, 1
      %s157 = scalar_select %p156, %s14, 1
      %s158 = smul.addr %s157, 16
      %s159 = smul.addr %s158, 8
      %s160 = scalar_lea.vmem %s3, %s159
      %p161 = scmp.lt.s32.totalorder %s14, 1
      %s162 = scalar_select %p161, %s14, 1
      %s163 = smul.addr %s162, 16
      %s164 = smul.addr %s163, 8
      %s165 = scalar_lea.vmem %s0, %s164
      %p166 = scmp.lt.s32.totalorder %s14, 1
      %s167 = scalar_select %p166, %s14, 1
      %s168 = smul.addr %s167, 16
      %s169 = smul.addr %s168, 8
      %s170 = scalar_lea.vmem %s3, %s169
      %v171 = vld [vmem:[%s165] sm:$0xff]
      %v172 = vld [vmem:[%s165 + $0x8] sm:$0xff]
      %v173 = vld [vmem:[%s165 + $0x10] sm:$0xff]
      %v174 = vld [vmem:[%s165 + $0x18] sm:$0xff]
      %v175 = vld [vmem:[%s165 + $0x20] sm:$0xff]
      %v176 = vld [vmem:[%s165 + $0x28] sm:$0xff]
      %v177 = vld [vmem:[%s165 + $0x30] sm:$0xff]
      %v178 = vld [vmem:[%s165 + $0x38] sm:$0xff]
      %v179 = vld [vmem:[%s165 + $0x40] sm:$0xff]
      %v180 = vld [vmem:[%s165 + $0x48] sm:$0xff]
      %v181 = vld [vmem:[%s165 + $0x50] sm:$0xff]
      %v182 = vld [vmem:[%s165 + $0x58] sm:$0xff]
      %v183 = vld [vmem:[%s165 + $0x60] sm:$0xff]
      %v184 = vld [vmem:[%s165 + $0x68] sm:$0xff]
      %v185 = vld [vmem:[%s165 + $0x70] sm:$0xff]
      %v186 = vld [vmem:[%s165 + $0x78] sm:$0xff]
      %v187 = vadd.f32 %v171, %v172
      %188 = vadd.xlane.f32.xlu0 %v187
      %v189 = vpop.xlane.xlu0 %188
      %v190 = vadd.f32 %v173, %v174
      %191 = vadd.xlane.f32.xlu0 %v190
      %v192 = vpop.xlane.xlu0 %191
      %v193 = vadd.f32 %v175, %v176
      %194 = vadd.xlane.f32.xlu0 %v193
      %v195 = vpop.xlane.xlu0 %194
      %v196 = vadd.f32 %v177, %v178
      %197 = vadd.xlane.f32.xlu0 %v196
      %v198 = vpop.xlane.xlu0 %197
      %v199 = vadd.f32 %v179, %v180
      %200 = vadd.xlane.f32.xlu0 %v199
      %v201 = vpop.xlane.xlu0 %200
      %v202 = vadd.f32 %v181, %v182
      %203 = vadd.xlane.f32.xlu0 %v202
      %v204 = vpop.xlane.xlu0 %203
      %v205 = vadd.f32 %v183, %v184
      %206 = vadd.xlane.f32.xlu0 %v205
      %v207 = vpop.xlane.xlu0 %206
      %v208 = vadd.f32 %v185, %v186
      %209 = vadd.xlane.f32.xlu0 %v208
      %v210 = vpop.xlane.xlu0 %209
      %v211 = vmul.f32 %v189, 0.00390625
      %v212 = vmul.f32 %v192, 0.00390625
      %v213 = vmul.f32 %v195, 0.00390625
      %v214 = vmul.f32 %v198, 0.00390625
      %v215 = vmul.f32 %v201, 0.00390625
      %v216 = vmul.f32 %v204, 0.00390625
      %v217 = vmul.f32 %v207, 0.00390625
      %v218 = vmul.f32 %v210, 0.00390625
      %v219 = vld [vmem:[%s1] sm:$0xf]
      %v220 = vld [vmem:[%s2] sm:$0xf]
      %v222 = vperm.slane %v219, 0
      %v223 = vlaneseq
      %v224 = vshrl.u32 %v223, 7
      %226 = vset.pattern.permute.xlu0 %v224
      %227 = vperm.xlu0 %226, %v222
      %v228 = vpop.permute.xlu0 %227
      %v229 = vlaneseq
      %v230 = vshrl.u32 %v229, 7
      %v231 = vadd.s32 %v230, 8
      %232 = vset.pattern.permute.xlu0 %v231
      %233 = vperm.xlu0 %232, %v222
      %v234 = vpop.permute.xlu0 %233
      %v235 = vlaneseq
      %v236 = vshrl.u32 %v235, 7
      %v237 = vadd.s32 %v236, 16
      %238 = vset.pattern.permute.xlu0 %v237
      %239 = vperm.xlu0 %238, %v222
      %v240 = vpop.permute.xlu0 %239
      %v241 = vlaneseq
      %v242 = vshrl.u32 %v241, 7
      %v243 = vadd.s32 %v242, 24
      %244 = vset.pattern.permute.xlu0 %v243
      %245 = vperm.xlu0 %244, %v222
      %v246 = vpop.permute.xlu0 %245
      %v247 = vlaneseq
      %v248 = vshrl.u32 %v247, 7
      %v249 = vadd.s32 %v248, 32
      %250 = vset.pattern.permute.xlu0 %v249
      %251 = vperm.xlu0 %250, %v222
      %v252 = vpop.permute.xlu0 %251
      %v253 = vlaneseq
      %v254 = vshrl.u32 %v253, 7
      %v255 = vadd.s32 %v254, 40
      %256 = vset.pattern.permute.xlu0 %v255
      %257 = vperm.xlu0 %256, %v222
      %v258 = vpop.permute.xlu0 %257
      %v259 = vlaneseq
      %v260 = vshrl.u32 %v259, 7
      %v261 = vadd.s32 %v260, 48
      %262 = vset.pattern.permute.xlu0 %v261
      %263 = vperm.xlu0 %262, %v222
      %v264 = vpop.permute.xlu0 %263
      %v265 = vlaneseq
      %v266 = vshrl.u32 %v265, 7
      %v267 = vadd.s32 %v266, 56
      %268 = vset.pattern.permute.xlu0 %v267
      %269 = vperm.xlu0 %268, %v222
      %v270 = vpop.permute.xlu0 %269
      %v271 = vperm.slane %v219, 1
      %v272 = vlaneseq
      %v273 = vshrl.u32 %v272, 7
      %275 = vset.pattern.permute.xlu0 %v273
      %276 = vperm.xlu0 %275, %v271
      %v277 = vpop.permute.xlu0 %276
      %v278 = vlaneseq
      %v279 = vshrl.u32 %v278, 7
      %v280 = vadd.s32 %v279, 8
      %281 = vset.pattern.permute.xlu0 %v280
      %282 = vperm.xlu0 %281, %v271
      %v283 = vpop.permute.xlu0 %282
      %v284 = vlaneseq
      %v285 = vshrl.u32 %v284, 7
      %v286 = vadd.s32 %v285, 16
      %287 = vset.pattern.permute.xlu0 %v286
      %288 = vperm.xlu0 %287, %v271
      %v289 = vpop.permute.xlu0 %288
      %v290 = vlaneseq
      %v291 = vshrl.u32 %v290, 7
      %v292 = vadd.s32 %v291, 24
      %293 = vset.pattern.permute.xlu0 %v292
      %294 = vperm.xlu0 %293, %v271
      %v295 = vpop.permute.xlu0 %294
      %v296 = vlaneseq
      %v297 = vshrl.u32 %v296, 7
      %v298 = vadd.s32 %v297, 32
      %299 = vset.pattern.permute.xlu0 %v298
      %300 = vperm.xlu0 %299, %v271
      %v301 = vpop.permute.xlu0 %300
      %v302 = vlaneseq
      %v303 = vshrl.u32 %v302, 7
      %v304 = vadd.s32 %v303, 40
      %305 = vset.pattern.permute.xlu0 %v304
      %306 = vperm.xlu0 %305, %v271
      %v307 = vpop.permute.xlu0 %306
      %v308 = vlaneseq
      %v309 = vshrl.u32 %v308, 7
      %v310 = vadd.s32 %v309, 48
      %311 = vset.pattern.permute.xlu0 %v310
      %312 = vperm.xlu0 %311, %v271
      %v313 = vpop.permute.xlu0 %312
      %v314 = vlaneseq
      %v315 = vshrl.u32 %v314, 7
      %v316 = vadd.s32 %v315, 56
      %317 = vset.pattern.permute.xlu0 %v316
      %318 = vperm.xlu0 %317, %v271
      %v319 = vpop.permute.xlu0 %318
      %v320 = vperm.slane %v219, 2
      %v321 = vlaneseq
      %v322 = vshrl.u32 %v321, 7
      %324 = vset.pattern.permute.xlu0 %v322
      %325 = vperm.xlu0 %324, %v320
      %v326 = vpop.permute.xlu0 %325
      %v327 = vlaneseq
      %v328 = vshrl.u32 %v327, 7
      %v329 = vadd.s32 %v328, 8
      %330 = vset.pattern.permute.xlu0 %v329
      %331 = vperm.xlu0 %330, %v320
      %v332 = vpop.permute.xlu0 %331
      %v333 = vlaneseq
      %v334 = vshrl.u32 %v333, 7
      %v335 = vadd.s32 %v334, 16
      %336 = vset.pattern.permute.xlu0 %v335
      %337 = vperm.xlu0 %336, %v320
      %v338 = vpop.permute.xlu0 %337
      %v339 = vlaneseq
      %v340 = vshrl.u32 %v339, 7
      %v341 = vadd.s32 %v340, 24
      %342 = vset.pattern.permute.xlu0 %v341
      %343 = vperm.xlu0 %342, %v320
      %v344 = vpop.permute.xlu0 %343
      %v345 = vlaneseq
      %v346 = vshrl.u32 %v345, 7
      %v347 = vadd.s32 %v346, 32
      %348 = vset.pattern.permute.xlu0 %v347
      %349 = vperm.xlu0 %348, %v320
      %v350 = vpop.permute.xlu0 %349
      %v351 = vlaneseq
      %v352 = vshrl.u32 %v351, 7
      %v353 = vadd.s32 %v352, 40
      %354 = vset.pattern.permute.xlu0 %v353
      %355 = vperm.xlu0 %354, %v320
      %v356 = vpop.permute.xlu0 %355
      %v357 = vlaneseq
      %v358 = vshrl.u32 %v357, 7
      %v359 = vadd.s32 %v358, 48
      %360 = vset.pattern.permute.xlu0 %v359
      %361 = vperm.xlu0 %360, %v320
      %v362 = vpop.permute.xlu0 %361
      %v363 = vlaneseq
      %v364 = vshrl.u32 %v363, 7
      %v365 = vadd.s32 %v364, 56
      %366 = vset.pattern.permute.xlu0 %v365
      %367 = vperm.xlu0 %366, %v320
      %v368 = vpop.permute.xlu0 %367
      %v369 = vperm.slane %v219, 3
      %v370 = vlaneseq
      %v371 = vshrl.u32 %v370, 7
      %373 = vset.pattern.permute.xlu0 %v371
      %374 = vperm.xlu0 %373, %v369
      %v375 = vpop.permute.xlu0 %374
      %v376 = vlaneseq
      %v377 = vshrl.u32 %v376, 7
      %v378 = vadd.s32 %v377, 8
      %379 = vset.pattern.permute.xlu0 %v378
      %380 = vperm.xlu0 %379, %v369
      %v381 = vpop.permute.xlu0 %380
      %v382 = vlaneseq
      %v383 = vshrl.u32 %v382, 7
      %v384 = vadd.s32 %v383, 16
      %385 = vset.pattern.permute.xlu0 %v384
      %386 = vperm.xlu0 %385, %v369
      %v387 = vpop.permute.xlu0 %386
      %v388 = vlaneseq
      %v389 = vshrl.u32 %v388, 7
      %v390 = vadd.s32 %v389, 24
      %391 = vset.pattern.permute.xlu0 %v390
      %392 = vperm.xlu0 %391, %v369
      %v393 = vpop.permute.xlu0 %392
      %v394 = vlaneseq
      %v395 = vshrl.u32 %v394, 7
      %v396 = vadd.s32 %v395, 32
      %397 = vset.pattern.permute.xlu0 %v396
      %398 = vperm.xlu0 %397, %v369
      %v399 = vpop.permute.xlu0 %398
      %v400 = vlaneseq
      %v401 = vshrl.u32 %v400, 7
      %v402 = vadd.s32 %v401, 40
      %403 = vset.pattern.permute.xlu0 %v402
      %404 = vperm.xlu0 %403, %v369
      %v405 = vpop.permute.xlu0 %404
      %v406 = vlaneseq
      %v407 = vshrl.u32 %v406, 7
      %v408 = vadd.s32 %v407, 48
      %409 = vset.pattern.permute.xlu0 %v408
      %410 = vperm.xlu0 %409, %v369
      %v411 = vpop.permute.xlu0 %410
      %v412 = vlaneseq
      %v413 = vshrl.u32 %v412, 7
      %v414 = vadd.s32 %v413, 56
      %415 = vset.pattern.permute.xlu0 %v414
      %416 = vperm.xlu0 %415, %v369
      %v417 = vpop.permute.xlu0 %416
      %v450 = vmul.f32 %v211, %v228
      %v451 = vmul.f32 %v212, %v234
      %v452 = vmul.f32 %v213, %v240
      %v453 = vmul.f32 %v214, %v246
      %v454 = vmul.f32 %v215, %v252
      %v455 = vmul.f32 %v216, %v258
      %v456 = vmul.f32 %v217, %v264
      %v457 = vmul.f32 %v218, %v270
      %v458 = vmul.f32 %v211, %v277
      %v459 = vmul.f32 %v212, %v283
      %v460 = vmul.f32 %v213, %v289
      %v461 = vmul.f32 %v214, %v295
      %v462 = vmul.f32 %v215, %v301
      %v463 = vmul.f32 %v216, %v307
      %v464 = vmul.f32 %v217, %v313
      %v465 = vmul.f32 %v218, %v319
      %v466 = vmul.f32 %v211, %v326
      %v467 = vmul.f32 %v212, %v332
      %v468 = vmul.f32 %v213, %v338
      %v469 = vmul.f32 %v214, %v344
      %v470 = vmul.f32 %v215, %v350
      %v471 = vmul.f32 %v216, %v356
      %v472 = vmul.f32 %v217, %v362
      %v473 = vmul.f32 %v218, %v368
      %v474 = vmul.f32 %v211, %v375
      %v475 = vmul.f32 %v212, %v381
      %v476 = vmul.f32 %v213, %v387
      %v477 = vmul.f32 %v214, %v393
      %v478 = vmul.f32 %v215, %v399
      %v479 = vmul.f32 %v216, %v405
      %v480 = vmul.f32 %v217, %v411
      %v481 = vmul.f32 %v218, %v417
      %514 = vset.pattern.permute.xlu0 0
      %515 = vperm.xlu0 %514, %v450
      %v516 = vpop.permute.xlu0 %515
      %517 = vset.pattern.permute.xlu0 0
      %518 = vperm.xlu0 %517, %v451
      %v519 = vpop.permute.xlu0 %518
      %520 = vset.pattern.permute.xlu0 0
      %521 = vperm.xlu0 %520, %v452
      %v522 = vpop.permute.xlu0 %521
      %523 = vset.pattern.permute.xlu0 0
      %524 = vperm.xlu0 %523, %v453
      %v525 = vpop.permute.xlu0 %524
      %526 = vset.pattern.permute.xlu0 0
      %527 = vperm.xlu0 %526, %v454
      %v528 = vpop.permute.xlu0 %527
      %529 = vset.pattern.permute.xlu0 0
      %530 = vperm.xlu0 %529, %v455
      %v531 = vpop.permute.xlu0 %530
      %532 = vset.pattern.permute.xlu0 0
      %533 = vperm.xlu0 %532, %v456
      %v534 = vpop.permute.xlu0 %533
      %535 = vset.pattern.permute.xlu0 0
      %536 = vperm.xlu0 %535, %v457
      %v537 = vpop.permute.xlu0 %536
      %538 = vset.pattern.permute.xlu0 0
      %539 = vperm.xlu0 %538, %v458
      %v540 = vpop.permute.xlu0 %539
      %541 = vset.pattern.permute.xlu0 0
      %542 = vperm.xlu0 %541, %v459
      %v543 = vpop.permute.xlu0 %542
      %544 = vset.pattern.permute.xlu0 0
      %545 = vperm.xlu0 %544, %v460
      %v546 = vpop.permute.xlu0 %545
      %547 = vset.pattern.permute.xlu0 0
      %548 = vperm.xlu0 %547, %v461
      %v549 = vpop.permute.xlu0 %548
      %550 = vset.pattern.permute.xlu0 0
      %551 = vperm.xlu0 %550, %v462
      %v552 = vpop.permute.xlu0 %551
      %553 = vset.pattern.permute.xlu0 0
      %554 = vperm.xlu0 %553, %v463
      %v555 = vpop.permute.xlu0 %554
      %556 = vset.pattern.permute.xlu0 0
      %557 = vperm.xlu0 %556, %v464
      %v558 = vpop.permute.xlu0 %557
      %559 = vset.pattern.permute.xlu0 0
      %560 = vperm.xlu0 %559, %v465
      %v561 = vpop.permute.xlu0 %560
      %562 = vset.pattern.permute.xlu0 0
      %563 = vperm.xlu0 %562, %v466
      %v564 = vpop.permute.xlu0 %563
      %565 = vset.pattern.permute.xlu0 0
      %566 = vperm.xlu0 %565, %v467
      %v567 = vpop.permute.xlu0 %566
      %568 = vset.pattern.permute.xlu0 0
      %569 = vperm.xlu0 %568, %v468
      %v570 = vpop.permute.xlu0 %569
      %571 = vset.pattern.permute.xlu0 0
      %572 = vperm.xlu0 %571, %v469
      %v573 = vpop.permute.xlu0 %572
      %574 = vset.pattern.permute.xlu0 0
      %575 = vperm.xlu0 %574, %v470
      %v576 = vpop.permute.xlu0 %575
      %577 = vset.pattern.permute.xlu0 0
      %578 = vperm.xlu0 %577, %v471
      %v579 = vpop.permute.xlu0 %578
      %580 = vset.pattern.permute.xlu0 0
      %581 = vperm.xlu0 %580, %v472
      %v582 = vpop.permute.xlu0 %581
      %583 = vset.pattern.permute.xlu0 0
      %584 = vperm.xlu0 %583, %v473
      %v585 = vpop.permute.xlu0 %584
      %586 = vset.pattern.permute.xlu0 0
      %587 = vperm.xlu0 %586, %v474
      %v588 = vpop.permute.xlu0 %587
      %589 = vset.pattern.permute.xlu0 0
      %590 = vperm.xlu0 %589, %v475
      %v591 = vpop.permute.xlu0 %590
      %592 = vset.pattern.permute.xlu0 0
      %593 = vperm.xlu0 %592, %v476
      %v594 = vpop.permute.xlu0 %593
      %595 = vset.pattern.permute.xlu0 0
      %596 = vperm.xlu0 %595, %v477
      %v597 = vpop.permute.xlu0 %596
      %598 = vset.pattern.permute.xlu0 0
      %599 = vperm.xlu0 %598, %v478
      %v600 = vpop.permute.xlu0 %599
      %601 = vset.pattern.permute.xlu0 0
      %602 = vperm.xlu0 %601, %v479
      %v603 = vpop.permute.xlu0 %602
      %604 = vset.pattern.permute.xlu0 0
      %605 = vperm.xlu0 %604, %v480
      %v606 = vpop.permute.xlu0 %605
      %607 = vset.pattern.permute.xlu0 0
      %608 = vperm.xlu0 %607, %v481
      %v609 = vpop.permute.xlu0 %608
      %v610 = vlaneseq
      %v611 = vand.u32 %v610, 127
      %v612 = vperm.slane %v516, %v611
      %v613 = vadd.s32 %v611, 4294967288
      %v614 = vperm.slane %v519, %v613
      %vm615 = vcmask 130112
      %v616 = vsel %vm615, %v614, %v612
      %v617 = vadd.s32 %v611, 4294967280
      %v618 = vperm.slane %v522, %v617
      %vm619 = vcmask 195712
      %v620 = vsel %vm619, %v618, %v616
      %v621 = vadd.s32 %v611, 4294967272
      %v622 = vperm.slane %v525, %v621
      %vm623 = vcmask 261312
      %v624 = vsel %vm623, %v622, %v620
      %v625 = vadd.s32 %v611, 4294967264
      %v626 = vperm.slane %v528, %v625
      %vm627 = vcmask 326912
      %v628 = vsel %vm627, %v626, %v624
      %v629 = vadd.s32 %v611, 4294967256
      %v630 = vperm.slane %v531, %v629
      %vm631 = vcmask 392512
      %v632 = vsel %vm631, %v630, %v628
      %v633 = vadd.s32 %v611, 4294967248
      %v634 = vperm.slane %v534, %v633
      %vm635 = vcmask 458112
      %v636 = vsel %vm635, %v634, %v632
      %v637 = vadd.s32 %v611, 4294967240
      %v638 = vperm.slane %v537, %v637
      %vm639 = vcmask 523712
      %v640 = vsel %vm639, %v638, %v636
      %v641 = vperm.slane %v540, %v611
      %v642 = vperm.slane %v543, %v613
      %v643 = vsel %vm615, %v642, %v641
      %v644 = vperm.slane %v546, %v617
      %v645 = vsel %vm619, %v644, %v643
      %v646 = vperm.slane %v549, %v621
      %v647 = vsel %vm623, %v646, %v645
      %v648 = vperm.slane %v552, %v625
      %v649 = vsel %vm627, %v648, %v647
      %v650 = vperm.slane %v555, %v629
      %v651 = vsel %vm631, %v650, %v649
      %v652 = vperm.slane %v558, %v633
      %v653 = vsel %vm635, %v652, %v651
      %v654 = vperm.slane %v561, %v637
      %v655 = vsel %vm639, %v654, %v653
      %v656 = vperm.slane %v564, %v611
      %v657 = vperm.slane %v567, %v613
      %v658 = vsel %vm615, %v657, %v656
      %v659 = vperm.slane %v570, %v617
      %v660 = vsel %vm619, %v659, %v658
      %v661 = vperm.slane %v573, %v621
      %v662 = vsel %vm623, %v661, %v660
      %v663 = vperm.slane %v576, %v625
      %v664 = vsel %vm627, %v663, %v662
      %v665 = vperm.slane %v579, %v629
      %v666 = vsel %vm631, %v665, %v664
      %v667 = vperm.slane %v582, %v633
      %v668 = vsel %vm635, %v667, %v666
      %v669 = vperm.slane %v585, %v637
      %v670 = vsel %vm639, %v669, %v668
      %v671 = vperm.slane %v588, %v611
      %v672 = vperm.slane %v591, %v613
      %v673 = vsel %vm615, %v672, %v671
      %v674 = vperm.slane %v594, %v617
      %v675 = vsel %vm619, %v674, %v673
      %v676 = vperm.slane %v597, %v621
      %v677 = vsel %vm623, %v676, %v675
      %v678 = vperm.slane %v600, %v625
      %v679 = vsel %vm627, %v678, %v677
      %v680 = vperm.slane %v603, %v629
      %v681 = vsel %vm631, %v680, %v679
      %v682 = vperm.slane %v606, %v633
      %v683 = vsel %vm635, %v682, %v681
      %v684 = vperm.slane %v609, %v637
      %v685 = vsel %vm639, %v684, %v683
      %vm686 = vcmask 1041409
      %v687 = vsel %vm686, %v655, %v640
      %vm688 = vcmask 1042434
      %v689 = vsel %vm688, %v670, %v687
      %vm690 = vcmask 1043459
      %v691 = vsel %vm690, %v685, %v689
      %vm693 = vcmask 519168
      %v694 = vsel %vm693, %v691, 0.0
      %695 = vadd.xlane.f32.xlu0 %v694
      %v696 = vpop.xlane.xlu0 %695
      %v697 = vmax.f32 %v696, 0.0
      %v698 = vmul.f32 %v697, %v220
      %v699 = vsel %vm693, %v698, 0.0
      %v700 = vrot.slane %v699, 4
      %v701 = vadd.f32 %v699, %v700
      %v702 = vrot.slane %v701, 2
      %v703 = vadd.f32 %v701, %v702
      %v704 = vrot.slane %v703, 1
      %v705 = vadd.f32 %v703, %v704
      %v706 = vxor.u32 %v705, 2147483648
      %v707 = vmul.f32 %v706, 1.442695
      %v708 = vpow.pop %v707
      %v709 = vadd.f32 %v708, 1.0
      %v710 = vrcp.pop %v709
      %v711 = vmul.f32 %v709, %v710
      %v712 = vsub.f32 1.0, %v711
      %v713 = vmul.f32 %v710, %v712
      %v714 = vadd.f32 %v710, %v713
      %vm715 = vweird.f32 %v709
      %vm716 = vweird.f32 %v710
      %vm717 = vmor %vm715, %vm716
      %v718 = vsel %vm717, %v710, %v714
      %v719 = vand.u32 2147483647, %v709
      %vm720 = vcmp.eq.f32.partialorder %v719, 8.507059e+37
      %v721 = vand.u32 %v709, 2147483648
      %v722 = vor.u32 1.1754944e-38, %v721
      %v723 = vsel %vm720, %v722, %v718
      %v724 = vmul.f32 1.0, %v723
      %v725 = vlaneseq
      %v726 = vshrl.u32 %v725, 7
      %728 = vset.pattern.permute.xlu0 %v726
      %729 = vperm.xlu0 %728, %v724
      %v730 = vpop.permute.xlu0 %729
      %v731 = vlaneseq
      %v732 = vshrl.u32 %v731, 7
      %v733 = vadd.s32 %v732, 8
      %734 = vset.pattern.permute.xlu0 %v733
      %735 = vperm.xlu0 %734, %v724
      %v736 = vpop.permute.xlu0 %735
      %v737 = vlaneseq
      %v738 = vshrl.u32 %v737, 7
      %v739 = vadd.s32 %v738, 16
      %740 = vset.pattern.permute.xlu0 %v739
      %741 = vperm.xlu0 %740, %v724
      %v742 = vpop.permute.xlu0 %741
      %v743 = vlaneseq
      %v744 = vshrl.u32 %v743, 7
      %v745 = vadd.s32 %v744, 24
      %746 = vset.pattern.permute.xlu0 %v745
      %747 = vperm.xlu0 %746, %v724
      %v748 = vpop.permute.xlu0 %747
      %v749 = vlaneseq
      %v750 = vshrl.u32 %v749, 7
      %v751 = vadd.s32 %v750, 32
      %752 = vset.pattern.permute.xlu0 %v751
      %753 = vperm.xlu0 %752, %v724
      %v754 = vpop.permute.xlu0 %753
      %v755 = vlaneseq
      %v756 = vshrl.u32 %v755, 7
      %v757 = vadd.s32 %v756, 40
      %758 = vset.pattern.permute.xlu0 %v757
      %759 = vperm.xlu0 %758, %v724
      %v760 = vpop.permute.xlu0 %759
      %v761 = vlaneseq
      %v762 = vshrl.u32 %v761, 7
      %v763 = vadd.s32 %v762, 48
      %764 = vset.pattern.permute.xlu0 %v763
      %765 = vperm.xlu0 %764, %v724
      %v766 = vpop.permute.xlu0 %765
      %v767 = vlaneseq
      %v768 = vshrl.u32 %v767, 7
      %v769 = vadd.s32 %v768, 56
      %770 = vset.pattern.permute.xlu0 %v769
      %771 = vperm.xlu0 %770, %v724
      %v772 = vpop.permute.xlu0 %771
      %v773 = vmul.f32 %v171, %v730
      %v774 = vmul.f32 %v172, %v730
      %v775 = vmul.f32 %v173, %v736
      %v776 = vmul.f32 %v174, %v736
      %v777 = vmul.f32 %v175, %v742
      %v778 = vmul.f32 %v176, %v742
      %v779 = vmul.f32 %v177, %v748
      %v780 = vmul.f32 %v178, %v748
      %v781 = vmul.f32 %v179, %v754
      %v782 = vmul.f32 %v180, %v754
      %v783 = vmul.f32 %v181, %v760
      %v784 = vmul.f32 %v182, %v760
      %v785 = vmul.f32 %v183, %v766
      %v786 = vmul.f32 %v184, %v766
      %v787 = vmul.f32 %v185, %v772
      %v788 = vmul.f32 %v186, %v772
      %789 = vst [vmem:[%s170] sm:$0xff] %v773
      %790 = vst [vmem:[%s170 + $0x8] sm:$0xff] %v774
      %791 = vst [vmem:[%s170 + $0x10] sm:$0xff] %v775
      %792 = vst [vmem:[%s170 + $0x18] sm:$0xff] %v776
      %793 = vst [vmem:[%s170 + $0x20] sm:$0xff] %v777
      %794 = vst [vmem:[%s170 + $0x28] sm:$0xff] %v778
      %795 = vst [vmem:[%s170 + $0x30] sm:$0xff] %v779
      %796 = vst [vmem:[%s170 + $0x38] sm:$0xff] %v780
      %797 = vst [vmem:[%s170 + $0x40] sm:$0xff] %v781
      %798 = vst [vmem:[%s170 + $0x48] sm:$0xff] %v782
      %799 = vst [vmem:[%s170 + $0x50] sm:$0xff] %v783
      %800 = vst [vmem:[%s170 + $0x58] sm:$0xff] %v784
      %801 = vst [vmem:[%s170 + $0x60] sm:$0xff] %v785
      %802 = vst [vmem:[%s170 + $0x68] sm:$0xff] %v786
      %803 = vst [vmem:[%s170 + $0x70] sm:$0xff] %v787
      %804 = vst [vmem:[%s170 + $0x78] sm:$0xff] %v788
      %p805 = scmp.lt.s32.totalorder %s14, 1
      %s806 = scalar_select %p805, %s14, 1
      %s807 = smul.addr %s806, 16
      %s808 = smul.addr %s807, 8
      %s809 = scalar_lea.vmem %s3, %s808
      // Predicated region
      $region33: #{channel_attention.1} parent=31 // pred_check
        %p810 = pneg %p100
      $region34: #{channel_attention.1} parent=31 // pred_check_branch
        %812 = sbr.rel (%p810) target = $region36
      $region35: #{channel_attention.1} parent=31 // pred_region
        _
      $region36: #{channel_attention.1} parent=31 // pred_fallthru
        _
    $region32: #{channel_attention.1} parent=5 // pred_fallthru
      _
    %p813 = scmp.le.s32.totalorder 2, %s9
    // Predicated region
    $region37: #{channel_attention.1} parent=5 // pred_check
      %p814 = pneg %p813
    $region38: #{channel_attention.1} parent=5 // pred_check_branch
      %816 = sbr.rel (%p814) target = $region40
    $region39: #{channel_attention.1} parent=5 // pred_region
      %s817 = ssub.s32 %s9, 2
      // Predicated region
      $region41: #{channel_attention.1} parent=39 // pred_check
        %p818 = pneg %p106
      $region42: #{channel_attention.1} parent=39 // pred_check_branch
        %820 = sbr.rel (%p818) target = $region44
      $region43: #{channel_attention.1} parent=39 // pred_region
        %p821 = scmp.lt.s32.totalorder %s15, 1
        %s822 = scalar_select %p821, %s15, 1
        %s823 = smul.addr %s822, 16
        %s824 = smul.addr %s823, 8
        %s825 = scalar_lea.vmem %s3, %s824
      $region44: #{channel_attention.1} parent=39 // pred_fallthru
        _
    $region40: #{channel_attention.1} parent=5 // pred_fallthru
      _
  $region6: #{channel_attention.1} parent=0 // loop_footer
    %s13 = sadd.s32 1, %s9
  $region7: #{channel_attention.1} parent=0 // loop_footer_branch
    %8 = sbr.rel target = $region3
  $region8: #{channel_attention.1} parent=0 // loop_exit
    _

</llo_original>
